<compile_context>
chip_gen: v7x
topology: tpu7x:2x2x1
jax: 0.10.0
libtpu: 0.0.40
codegen_flags: <defaults>
</compile_context>

<pallas_src>
import math

import jax
import jax.numpy as jnp
from jax.experimental import pallas as pl
from jax.experimental.pallas import tpu as pltpu


def _round_up(x, m):
    return (x + m - 1) // m * m


def _pick_row_tile(N, tm_max=512, min_steps=4):
    """Largest row tile (multiple of 8, <= tm_max) that still gives >= min_steps
    grid steps when N allows (>= 2 steps per v7x TensorCore for DMA overlap)."""
    tm = min(tm_max, _round_up(N, 8))
    while tm > 8 and pl.cdiv(N, tm) < min_steps:
        tm = max(8, _round_up(tm // 2, 8))
    return tm


def _pick_hidden_chunk(ch, tk_max=512):
    """Hidden-dim chunk that exactly divides the (128-padded) hidden dim, so the
    reduction axis never has a ragged chunk."""
    if ch <= tk_max:
        return ch
    for cand in (512, 384, 256, 128):
        if cand <= tk_max and ch % cand == 0:
            return cand
    return 128  # ch is always a multiple of 128


def _vmem_limit_bytes(tm, tk, c_in, co, x_itemsize, w_itemsize, out_itemsize):
    """Size-derived VMEM budget with headroom, capped at ~3/4 of physical VMEM."""
    need = (
        2 * tm * c_in * x_itemsize      # x row tile (double-buffered)
        + 2 * c_in * tk * w_itemsize    # W1 hidden-chunk
        + 2 * tk * 4                    # b1 hidden-chunk (f32)
        + 2 * tk * co * w_itemsize      # W2 hidden-chunk
        + 2 * co * 4                    # b2
        + 2 * tm * co * out_itemsize    # output tile
        + tm * co * 4                   # f32 accumulator scratch
        + tm * tk * 4                   # f32 hidden intermediate
    )
    try:
        cap = pltpu.get_tpu_info().vmem_capacity_bytes
    except Exception:  # older runtimes / CPU interpret
        cap = 64 * 1024 * 1024
    return int(min(cap * 3 // 4, max(2 * need, 32 * 1024 * 1024)))


def mlp_kernel(x_ref, w1_ref, b1_ref, w2_ref, b2_ref, o_ref, acc_ref):
    k = pl.program_id(1)

    @pl.when(k == 0)
    def _():
        acc_ref[...] = jnp.zeros_like(acc_ref)

    # Layer 1 (this hidden chunk): bf16 operands on the MXU, f32 accumulation.
    x = x_ref[...].astype(w1_ref.dtype)                               # (tm, c_in)
    h = jnp.dot(x, w1_ref[...], preferred_element_type=jnp.float32)   # (tm, tk) f32
    # Bias + ReLU in f32 (v5e VPU has no bf16 path).
    h = jnp.maximum(h + b1_ref[...], 0.0)
    # Dropout: identity (inference / eval mode).
    # Layer 2: accumulate this hidden chunk's contribution.
    acc_ref[...] += jnp.dot(h.astype(w2_ref.dtype), w2_ref[...],
                            preferred_element_type=jnp.float32)       # (tm, co) f32

    @pl.when(k == pl.num_programs(1) - 1)
    def _():
        o_ref[...] = (acc_ref[...] + b2_ref[...]).astype(o_ref.dtype)


def prepare_params(w1, b1, w2, b2, *, lane=128, w_dtype=jnp.bfloat16):
    """ONE-TIME pad + cast of the MLP weights (hoisted off the per-call path).

    w1: (c_in, c_hidden); b1: (c_hidden,) or (1, c_hidden);
    w2: (c_hidden, c_out); b2: (c_out,) or (1, c_out).
    Hidden/output dims are zero-padded to lane multiples so every kernel
    load/store is lane-dense; padding is mathematically inert (zero weights +
    zero bias -> ReLU(0)=0 -> zero contribution).
    """
    c_in, c_hidden = w1.shape
    c_out = w2.shape[1]
    ch = _round_up(c_hidden, lane)
    co = _round_up(c_out, lane)
    b1 = jnp.reshape(b1, (1, -1)).astype(jnp.float32)
    b2 = jnp.reshape(b2, (1, -1)).astype(jnp.float32)
    w1p = jnp.zeros((c_in, ch), w_dtype).at[:, :c_hidden].set(w1.astype(w_dtype))
    b1p = jnp.zeros((1, ch), jnp.float32).at[:, :c_hidden].set(b1)
    w2p = jnp.zeros((ch, co), w_dtype).at[:c_hidden, :c_out].set(w2.astype(w_dtype))
    b2p = jnp.zeros((1, co), jnp.float32).at[:, :c_out].set(b2)
    return (w1p, b1p, w2p, b2p), c_out


def mlp_forward(x, w1p, b1p, w2p, b2p, *, c_out, tm_max=512, tk_max=512):
    """x: (N, c_in) -> (N, c_out). Weights must come from prepare_params()."""
    N, c_in = x.shape
    ch = w1p.shape[1]
    co = w2p.shape[1]
    assert w1p.shape[0] == c_in and w2p.shape == (ch, co)

    tm = _pick_row_tile(N, tm_max)
    tk = _pick_hidden_chunk(ch, tk_max)
    grid = (pl.cdiv(N, tm), ch // tk)

    out = pl.pallas_call(
        mlp_kernel,
        out_shape=jax.ShapeDtypeStruct((N, co), x.dtype),
        grid_spec=pltpu.PrefetchScalarGridSpec(
            num_scalar_prefetch=0,
            grid=grid,
            in_specs=[
                pl.BlockSpec((tm, c_in), lambda i, k: (i, 0)),   # x row tile (revisited over k)
                pl.BlockSpec((c_in, tk), lambda i, k: (0, k)),   # W1 hidden-chunk (streams)
                pl.BlockSpec((1, tk), lambda i, k: (0, k)),      # b1 hidden-chunk
                pl.BlockSpec((tk, co), lambda i, k: (k, 0)),     # W2 hidden-chunk (streams)
                pl.BlockSpec((1, co), lambda i, k: (0, 0)),      # b2 (resident)
            ],
            out_specs=pl.BlockSpec((tm, co), lambda i, k: (i, 0)),
            scratch_shapes=[pltpu.VMEM((tm, co), jnp.float32)],
        ),
        compiler_params=pltpu.CompilerParams(
            dimension_semantics=("parallel", "arbitrary"),
            vmem_limit_bytes=_vmem_limit_bytes(
                tm, tk, c_in, co,
                x.dtype.itemsize, w1p.dtype.itemsize, x.dtype.itemsize),
        ),
    )(x, w1p, b1p, w2p, b2p)

    # Slice off the padded output feature columns only (rows were never padded).
    return out[:, :c_out]


def init_linear(key, fan_in, fan_out, dtype=jnp.float32):
    """Deterministic PyTorch-style nn.Linear init; weight returned as (fan_in, fan_out)."""
    kw, kb = jax.random.split(key)
    bound = 1.0 / math.sqrt(fan_in)
    w = jax.random.uniform(kw, (fan_in, fan_out), dtype, -bound, bound)
    b = jax.random.uniform(kb, (1, fan_out), dtype, -bound, bound)
    return w, b


if __name__ == "__main__":
    # Small shapes consistent with the module: N nodes, c_in -> c_hidden -> c_out.
    N, c_in, c_hidden, c_out = 256, 16, 32, 8

    key = jax.random.PRNGKey(0)
    kx, k1, k2 = jax.random.split(key, 3)

    x = jax.random.normal(kx, (N, c_in), jnp.float32)
    w1, b1 = init_linear(k1, c_in, c_hidden)
    w2, b2 = init_linear(k2, c_hidden, c_out)

    # One-time weight prep (pad + bf16 cast) -- off the steady-state path.
    (w1p, b1p, w2p, b2p), _ = prepare_params(w1, b1, w2, b2)
    w1p, b1p, w2p, b2p = jax.block_until_ready((w1p, b1p, w2p, b2p))

    # Single jit so any remaining wrapper ops fuse with the pallas_call.
    fwd = jax.jit(lambda xx: mlp_forward(xx, w1p, b1p, w2p, b2p, c_out=c_out))
    out = jax.block_until_ready(fwd(x))
    assert out.shape == (N, c_out)

    # Reference 1: same math with the same bf16 operand rounding (f32 accumulate),
    # dropout = identity (eval mode).
    w1b, w2b = w1.astype(jnp.bfloat16), w2.astype(jnp.bfloat16)
    h_ref = jnp.dot(x.astype(jnp.bfloat16), w1b, preferred_element_type=jnp.float32) + b1
    h_ref = jnp.maximum(h_ref, 0.0)
    ref = jnp.dot(h_ref.astype(jnp.bfloat16), w2b, preferred_element_type=jnp.float32) + b2
    assert jnp.allclose(out, ref, atol=2e-2, rtol=2e-2), "mismatch vs bf16 reference"

    # Reference 2: pure f32 (bf16 rounding is the only expected difference).
    ref_f32 = jnp.maximum(x @ w1 + b1, 0.0) @ w2 + b2
    assert jnp.allclose(out, ref_f32, atol=5e-2, rtol=5e-2), "mismatch vs f32 reference"

    print("KERNEL_OK")
</pallas_src>

<mosaic_0001>
module attributes {stable_mosaic.version = 11 : i64} {
  func.func @mlp_kernel(%arg0: i32, %arg1: i32, %arg2: memref<64x16xf32, #tpu.memory_space<vmem>>, %arg3: memref<16x128xbf16, #tpu.memory_space<vmem>>, %arg4: memref<1x128xf32, #tpu.memory_space<vmem>>, %arg5: memref<128x128xbf16, #tpu.memory_space<vmem>>, %arg6: memref<1x128xf32, #tpu.memory_space<vmem>>, %arg7: memref<64x128xf32, #tpu.memory_space<vmem>>, %arg8: memref<64x128xf32, #tpu.memory_space<vmem>>) attributes {dimension_semantics = [#tpu.dimension_semantics<parallel>, #tpu.dimension_semantics<arbitrary>], iteration_bounds = array<i64: 4, 1>, scalar_prefetch = 0 : i64, scratch_operands = 1 : i64, tpu.core_type = #tpu.core_type<tc>, window_params = [{transform_indices = @transform_0, window_bounds = array<i64: 64, 16>}, {transform_indices = @transform_1, window_bounds = array<i64: 16, 128>}, {transform_indices = @transform_2, window_bounds = array<i64: 1, 128>}, {transform_indices = @transform_3, window_bounds = array<i64: 128, 128>}, {pipeline_mode = #tpu.pipeline_mode<synchronous>, transform_indices = @transform_4, window_bounds = array<i64: 1, 128>}, {transform_indices = @transform_5, window_bounds = array<i64: 64, 128>}]} {
    %c0_i32 = arith.constant 0 : i32
    %0 = arith.cmpi eq, %arg1, %c0_i32 : i32
    %1 = arith.extui %0 : i1 to i32
    %c0_i32_0 = arith.constant 0 : i32
    %2 = arith.cmpi ne, %1, %c0_i32_0 : i32
    scf.if %2 {
      %cst_16 = arith.constant 0.000000e+00 : f32
      %21 = vector.broadcast %cst_16 : f32 to vector<64x128xf32>
      %c0_17 = arith.constant 0 : index
      %c0_18 = arith.constant 0 : index
      %22 = vector.load %arg8[%c0_17, %c0_18] : memref<64x128xf32, #tpu.memory_space<vmem>>, vector<64x128xf32>
      tpu.vector_store %arg8[%c0_17, %c0_18], %21 {strides = array<i32>} : memref<64x128xf32, #tpu.memory_space<vmem>>, vector<64x128xf32>,
    } else {
    }
    %c0 = arith.constant 0 : index
    %c0_1 = arith.constant 0 : index
    %3 = vector.load %arg2[%c0, %c0_1] : memref<64x16xf32, #tpu.memory_space<vmem>>, vector<64x16xf32>
    %4 = arith.truncf %3 : vector<64x16xf32> to vector<64x16xbf16>
    %c0_2 = arith.constant 0 : index
    %c0_3 = arith.constant 0 : index
    %5 = vector.load %arg3[%c0_2, %c0_3] : memref<16x128xbf16, #tpu.memory_space<vmem>>, vector<16x128xbf16>
    %cst = arith.constant dense<0.000000e+00> : vector<64x128xf32>
    %6 = tpu.matmul %4, %5, %cst {dimension_numbers = #tpu.dot_dimension_numbers<[1], [0], [0], [1], [0, 0, 1, 1], [], []>} : vector<64x16xbf16>, vector<16x128xbf16>, vector<64x128xf32> -> vector<64x128xf32>
    %c0_4 = arith.constant 0 : index
    %c0_5 = arith.constant 0 : index
    %7 = vector.load %arg4[%c0_4, %c0_5] : memref<1x128xf32, #tpu.memory_space<vmem>>, vector<1x128xf32>
    %8 = vector.broadcast %7 : vector<1x128xf32> to vector<64x128xf32>
    %9 = arith.addf %6, %8 : vector<64x128xf32>
    %cst_6 = arith.constant 0.000000e+00 : f32
    %10 = vector.broadcast %cst_6 : f32 to vector<64x128xf32>
    %11 = arith.maximumf %9, %10 : vector<64x128xf32>
    %c0_7 = arith.constant 0 : index
    %c0_8 = arith.constant 0 : index
    %12 = vector.load %arg8[%c0_7, %c0_8] : memref<64x128xf32, #tpu.memory_space<vmem>>, vector<64x128xf32>
    %13 = arith.truncf %11 : vector<64x128xf32> to vector<64x128xbf16>
    %c0_9 = arith.constant 0 : index
    %c0_10 = arith.constant 0 : index
    %14 = vector.load %arg5[%c0_9, %c0_10] : memref<128x128xbf16, #tpu.memory_space<vmem>>, vector<128x128xbf16>
    %cst_11 = arith.constant dense<0.000000e+00> : vector<64x128xf32>
    %15 = tpu.matmul %13, %14, %cst_11 {dimension_numbers = #tpu.dot_dimension_numbers<[1], [0], [0], [1], [0, 0, 1, 1], [], []>} : vector<64x128xbf16>, vector<128x128xbf16>, vector<64x128xf32> -> vector<64x128xf32>
    %16 = arith.addf %12, %15 : vector<64x128xf32>
    %c0_12 = arith.constant 0 : index
    %c0_13 = arith.constant 0 : index
    %17 = vector.load %arg8[%c0_12, %c0_13] : memref<64x128xf32, #tpu.memory_space<vmem>>, vector<64x128xf32>
    tpu.vector_store %arg8[%c0_12, %c0_13], %16 {strides = array<i32>} : memref<64x128xf32, #tpu.memory_space<vmem>>, vector<64x128xf32>,
    %c0_i32_14 = arith.constant 0 : i32
    %18 = arith.cmpi eq, %arg1, %c0_i32_14 : i32
    %19 = arith.extui %18 : i1 to i32
    %c0_i32_15 = arith.constant 0 : i32
    %20 = arith.cmpi ne, %19, %c0_i32_15 : i32
    scf.if %20 {
      %c0_16 = arith.constant 0 : index
      %c0_17 = arith.constant 0 : index
      %21 = vector.load %arg8[%c0_16, %c0_17] : memref<64x128xf32, #tpu.memory_space<vmem>>, vector<64x128xf32>
      %c0_18 = arith.constant 0 : index
      %c0_19 = arith.constant 0 : index
      %22 = vector.load %arg6[%c0_18, %c0_19] : memref<1x128xf32, #tpu.memory_space<vmem>>, vector<1x128xf32>
      %23 = vector.broadcast %22 : vector<1x128xf32> to vector<64x128xf32>
      %24 = arith.addf %21, %23 : vector<64x128xf32>
      %c0_20 = arith.constant 0 : index
      %c0_21 = arith.constant 0 : index
      %25 = vector.load %arg7[%c0_20, %c0_21] : memref<64x128xf32, #tpu.memory_space<vmem>>, vector<64x128xf32>
      tpu.vector_store %arg7[%c0_20, %c0_21], %24 {strides = array<i32>} : memref<64x128xf32, #tpu.memory_space<vmem>>, vector<64x128xf32>,
    } else {
    }
    return
  }
  func.func @transform_0(%arg0: i32, %arg1: i32) -> (i32, i32) {
    %c0_i32 = arith.constant 0 : i32
    %c0_i32_0 = arith.constant 0 : i32
    return %arg0, %c0_i32 : i32, i32
  }
  func.func @transform_1(%arg0: i32, %arg1: i32) -> (i32, i32) {
    %c0_i32 = arith.constant 0 : i32
    %c0_i32_0 = arith.constant 0 : i32
    return %c0_i32, %arg1 : i32, i32
  }
  func.func @transform_2(%arg0: i32, %arg1: i32) -> (i32, i32) {
    %c0_i32 = arith.constant 0 : i32
    %c0_i32_0 = arith.constant 0 : i32
    return %c0_i32, %arg1 : i32, i32
  }
  func.func @transform_3(%arg0: i32, %arg1: i32) -> (i32, i32) {
    %c0_i32 = arith.constant 0 : i32
    %c0_i32_0 = arith.constant 0 : i32
    return %arg1, %c0_i32 : i32, i32
  }
  func.func @transform_4(%arg0: i32, %arg1: i32) -> (i32, i32) {
    %c0_i32 = arith.constant 0 : i32
    %c0_i32_0 = arith.constant 0 : i32
    %c0_i32_1 = arith.constant 0 : i32
    return %c0_i32, %c0_i32_0 : i32, i32
  }
  func.func @transform_5(%arg0: i32, %arg1: i32) -> (i32, i32) {
    %c0_i32 = arith.constant 0 : i32
    %c0_i32_0 = arith.constant 0 : i32
    return %arg0, %c0_i32 : i32, i32
  }
}

</mosaic_0001>

<llo_original>
// kernel: _lambda_.1
$region0: #{_lambda_.1}
  #allocation0 [shape = 'u32[]', space=smem, size = 0x4, offset = 0x4, fixed_abs, tag = 'smem constant byte address 0x4 - core index']
  #allocation1 [shape = 'u32[144,128]{1,0:T(1,128)}', space=vmem, size = 0x12000, scoped, tag = 'internal scratch']
  #allocation2 [shape = 'f32[64,128]{1,0:T(8,128)}', space=vmem, size = 0x8000, scoped, tag = 'scratch operand']
  %s0 = inlined_call_operand.vmem [shape: f32[256,16], index: 0, kind: input, shape index: {}]
  %s1 = inlined_call_operand.vmem [shape: bf16[16,128], index: 1, kind: input, shape index: {}]
  %s2 = inlined_call_operand.vmem [shape: f32[1,128], index: 2, kind: input, shape index: {}]
  %s3 = inlined_call_operand.vmem [shape: bf16[128,128], index: 3, kind: input, shape index: {}]
  %s4 = inlined_call_operand.vmem [shape: f32[1,128], index: 4, kind: input, shape index: {}]
  %s5 = inlined_call_operand.vmem [shape: f32[256,128], index: 5, kind: output, shape index: {}]
  %s6 = sld [smem:[#allocation0]]
  $region61: #{_lambda_.1} parent=0
    _
  %s8 = ssub.s32 1, %s6
  %s9 = scalar_select 0, %s8, %s6
  loop: start=0, step=1, limit=6
  $region2: #{_lambda_.1} parent=0 // loop_pre_header
    _
  $region3: #{_lambda_.1} parent=0 // loop_header
    %s11 = sphi 0, %s15
    %p12 = scmp.ge.s32.totalorder %s11, 6
    %s18 = sphi 0, %s30
    %s19 = sphi 0, %s26
    %s20 = sphi 0, %s18
    %s21 = sphi 0, %s19
    %s22 = sphi 0, %s20
    %s23 = sphi 0, %s21
    %s33 = sphi 0, %s35
    %s36 = sphi 0, %s33
    %s37 = sphi 0, %s36
    %s53 = sphi 0, %s37
    %s59 = sphi 0, %s61
    %s62 = sphi 0, %s59
    %s63 = sphi 0, %s62
    %s79 = sphi 0, %s63
    %s85 = sphi 0, %s87
    %s88 = sphi 0, %s85
    %s89 = sphi 0, %s88
    %s105 = sphi 0, %s89
    %s111 = sphi 0, %s113
    %s114 = sphi 0, %s111
    %s115 = sphi 0, %s114
    %s131 = sphi 0, %s115
    %s135 = sphi 0, %s135
    %s137 = sphi 0, %s135
    %s138 = sphi 0, %s137
    %s152 = sphi 0, %s138
    %s158 = sphi 0, %s160
    %s161 = sphi 0, %s158
    %s162 = sphi 0, %s161
    %s178 = sphi 0, %s162
  $region4: #{_lambda_.1} parent=0 // loop_header_branch
    %14 = sbr.rel (%p12) target = $region8
  $region5: #{_lambda_.1} parent=0 // loop_body
    %s16 = ssub.s32 %s11, 1
    %s17 = ssub.s32 %s11, 2
    %s24 = sadd.s32 1, %s19
    %p25 = scmp.ge.s32.totalorder %s24, 1
    %s26 = scalar_select %p25, 0, %s24
    %s27 = sadd.s32 1, %s18
    %s28 = scalar_select %p25, %s27, %s18
    %p29 = scmp.ge.s32.totalorder %s28, 4
    %s30 = scalar_select %p29, 0, %s28
    %s31 = ssub.s32 %s18, %s30
    %p32 = scmp.eq.s32.totalorder %s31, 0
    %s34 = sadd.s32 %s33, 1
    %s35 = scalar_select %p32, %s33, %s34
    %p38 = pneg %p32
    %p39 = scmp.eq.s32.totalorder %s11, 3
    %p40 = por %p38, %p39
    %p41 = scmp.ne.s32.totalorder %s33, %s36
    %p42 = scmp.eq.s32.totalorder %s11, 0
    %p43 = por %p41, %p42
    %p44 = scmp.ne.s32.totalorder %s33, %s36
    %p45 = scmp.eq.s32.totalorder %s16, 3
    %p46 = por %p44, %p45
    %p47 = scmp.ne.s32.totalorder %s36, %s37
    %p48 = scmp.eq.s32.totalorder %s16, 0
    %p49 = por %p47, %p48
    %p50 = scmp.ne.s32.totalorder %s36, %s37
    %p51 = scmp.eq.s32.totalorder %s17, 3
    %p52 = por %p50, %p51
    %p54 = scmp.ne.s32.totalorder %s37, %s53
    %p55 = scmp.eq.s32.totalorder %s17, 0
    %p56 = por %p54, %p55
    %s57 = ssub.s32 %s19, %s26
    %p58 = scmp.eq.s32.totalorder %s57, 0
    %s60 = sadd.s32 %s59, 1
    %s61 = scalar_select %p58, %s59, %s60
    %p64 = pneg %p58
    %p65 = scmp.eq.s32.totalorder %s11, 3
    %p66 = por %p64, %p65
    %p67 = scmp.ne.s32.totalorder %s59, %s62
    %p68 = scmp.eq.s32.totalorder %s11, 0
    %p69 = por %p67, %p68
    %p70 = scmp.ne.s32.totalorder %s59, %s62
    %p71 = scmp.eq.s32.totalorder %s16, 3
    %p72 = por %p70, %p71
    %p73 = scmp.ne.s32.totalorder %s62, %s63
    %p74 = scmp.eq.s32.totalorder %s16, 0
    %p75 = por %p73, %p74
    %p76 = scmp.ne.s32.totalorder %s62, %s63
    %p77 = scmp.eq.s32.totalorder %s17, 3
    %p78 = por %p76, %p77
    %p80 = scmp.ne.s32.totalorder %s63, %s79
    %p81 = scmp.eq.s32.totalorder %s17, 0
    %p82 = por %p80, %p81
    %s83 = ssub.s32 %s19, %s26
    %p84 = scmp.eq.s32.totalorder %s83, 0
    %s86 = sadd.s32 %s85, 1
    %s87 = scalar_select %p84, %s85, %s86
    %p90 = pneg %p84
    %p91 = scmp.eq.s32.totalorder %s11, 3
    %p92 = por %p90, %p91
    %p93 = scmp.ne.s32.totalorder %s85, %s88
    %p94 = scmp.eq.s32.totalorder %s11, 0
    %p95 = por %p93, %p94
    %p96 = scmp.ne.s32.totalorder %s85, %s88
    %p97 = scmp.eq.s32.totalorder %s16, 3
    %p98 = por %p96, %p97
    %p99 = scmp.ne.s32.totalorder %s88, %s89
    %p100 = scmp.eq.s32.totalorder %s16, 0
    %p101 = por %p99, %p100
    %p102 = scmp.ne.s32.totalorder %s88, %s89
    %p103 = scmp.eq.s32.totalorder %s17, 3
    %p104 = por %p102, %p103
    %p106 = scmp.ne.s32.totalorder %s89, %s105
    %p107 = scmp.eq.s32.totalorder %s17, 0
    %p108 = por %p106, %p107
    %s109 = ssub.s32 %s19, %s26
    %p110 = scmp.eq.s32.totalorder %s109, 0
    %s112 = sadd.s32 %s111, 1
    %s113 = scalar_select %p110, %s111, %s112
    %p116 = pneg %p110
    %p117 = scmp.eq.s32.totalorder %s11, 3
    %p118 = por %p116, %p117
    %p119 = scmp.ne.s32.totalorder %s111, %s114
    %p120 = scmp.eq.s32.totalorder %s11, 0
    %p121 = por %p119, %p120
    %p122 = scmp.ne.s32.totalorder %s111, %s114
    %p123 = scmp.eq.s32.totalorder %s16, 3
    %p124 = por %p122, %p123
    %p125 = scmp.ne.s32.totalorder %s114, %s115
    %p126 = scmp.eq.s32.totalorder %s16, 0
    %p127 = por %p125, %p126
    %p128 = scmp.ne.s32.totalorder %s114, %s115
    %p129 = scmp.eq.s32.totalorder %s17, 3
    %p130 = por %p128, %p129
    %p132 = scmp.ne.s32.totalorder %s115, %s131
    %p133 = scmp.eq.s32.totalorder %s17, 0
    %p134 = por %p132, %p133
    %s136 = sadd.s32 %s135, 1
    %p139 = scmp.eq.s32.totalorder %s11, 3
    %p140 = scmp.ne.s32.totalorder %s135, %s137
    %p141 = scmp.eq.s32.totalorder %s11, 0
    %p142 = por %p140, %p141
    %p143 = scmp.ne.s32.totalorder %s135, %s137
    %p144 = scmp.eq.s32.totalorder %s16, 3
    %p145 = por %p143, %p144
    %p146 = scmp.ne.s32.totalorder %s137, %s138
    %p147 = scmp.eq.s32.totalorder %s16, 0
    %p148 = por %p146, %p147
    %p149 = scmp.ne.s32.totalorder %s137, %s138
    %p150 = scmp.eq.s32.totalorder %s17, 3
    %p151 = por %p149, %p150
    %p153 = scmp.ne.s32.totalorder %s138, %s152
    %p154 = scmp.eq.s32.totalorder %s17, 0
    %p155 = por %p153, %p154
    %s156 = ssub.s32 %s18, %s30
    %p157 = scmp.eq.s32.totalorder %s156, 0
    %s159 = sadd.s32 %s158, 1
    %s160 = scalar_select %p157, %s158, %s159
    %p163 = pneg %p157
    %p164 = scmp.eq.s32.totalorder %s11, 3
    %p165 = por %p163, %p164
    %p166 = scmp.ne.s32.totalorder %s158, %s161
    %p167 = scmp.eq.s32.totalorder %s11, 0
    %p168 = por %p166, %p167
    %p169 = scmp.ne.s32.totalorder %s158, %s161
    %p170 = scmp.eq.s32.totalorder %s16, 3
    %p171 = por %p169, %p170
    %p172 = scmp.ne.s32.totalorder %s161, %s162
    %p173 = scmp.eq.s32.totalorder %s16, 0
    %p174 = por %p172, %p173
    %p175 = scmp.ne.s32.totalorder %s161, %s162
    %p176 = scmp.eq.s32.totalorder %s17, 3
    %p177 = por %p175, %p176
    %p179 = scmp.ne.s32.totalorder %s162, %s178
    %p180 = scmp.eq.s32.totalorder %s17, 0
    %p181 = por %p179, %p180
    %p182 = scmp.le.s32.totalorder 1, %s11
    %p183 = scmp.lt.s32.totalorder %s11, 5
    %p184 = pnand %p182, %p183
    %p185 = pneg %p184
    // Predicated region
    $region9: #{_lambda_.1} parent=5 // pred_check
      _
    $region10: #{_lambda_.1} parent=5 // pred_check_branch
      %187 = sbr.rel (%p184) target = $region12
    $region11: #{_lambda_.1} parent=5 // pred_region
      %s188 = ssub.s32 %s11, 1
      // Predicated region
      $region13: #{_lambda_.1} parent=11 // pred_check
        %p189 = pneg %p75
      $region14: #{_lambda_.1} parent=11 // pred_check_branch
        %191 = sbr.rel (%p189) target = $region16
      $region15: #{_lambda_.1} parent=11 // pred_region
        %p192 = scmp.lt.s32.totalorder %s21, 0
        %s193 = scalar_select %p192, %s21, 0
        %s194 = smul.addr %s193, 4
        %s195 = scalar_lea.vmem %s1, %s194
      $region16: #{_lambda_.1} parent=11 // pred_fallthru
        _
      // Predicated region
      $region17: #{_lambda_.1} parent=11 // pred_check
        %p196 = pneg %p101
      $region18: #{_lambda_.1} parent=11 // pred_check_branch
        %198 = sbr.rel (%p196) target = $region20
      $region19: #{_lambda_.1} parent=11 // pred_region
        %p199 = scmp.lt.s32.totalorder %s21, 0
        %s200 = scalar_select %p199, %s21, 0
        %s201 = scalar_lea.vmem %s2, %s200
      $region20: #{_lambda_.1} parent=11 // pred_fallthru
        _
      // Predicated region
      $region21: #{_lambda_.1} parent=11 // pred_check
        %p202 = pneg %p127
      $region22: #{_lambda_.1} parent=11 // pred_check_branch
        %204 = sbr.rel (%p202) target = $region24
      $region23: #{_lambda_.1} parent=11 // pred_region
        %s205 = smul.u32 16, %s21
        %p206 = scmp.lt.s32.totalorder %s205, 15
        %s207 = scalar_select %p206, %s205, 15
        %s208 = smul.addr %s207, 4
        %s209 = scalar_lea.vmem %s3, %s208
        %s210 = smul.u32 16, %s21
      $region24: #{_lambda_.1} parent=11 // pred_fallthru
        _
      // Predicated region
      $region25: #{_lambda_.1} parent=11 // pred_check
        %p211 = pneg %p148
      $region26: #{_lambda_.1} parent=11 // pred_check_branch
        %213 = sbr.rel (%p211) target = $region28
      $region27: #{_lambda_.1} parent=11 // pred_region
        _
      $region28: #{_lambda_.1} parent=11 // pred_fallthru
        _
    $region12: #{_lambda_.1} parent=5 // pred_fallthru
      _
    %p214 = scmp.lt.s32.totalorder %s11, 4
    // Predicated region
    $region29: #{_lambda_.1} parent=5 // pred_check
      %p215 = pneg %p214
    $region30: #{_lambda_.1} parent=5 // pred_check_branch
      %217 = sbr.rel (%p215) target = $region32
    $region31: #{_lambda_.1} parent=5 // pred_region
      // Predicated region
      $region33: #{_lambda_.1} parent=31 // pred_check
        %p218 = pneg %p43
      $region34: #{_lambda_.1} parent=31 // pred_check_branch
        %220 = sbr.rel (%p218) target = $region36
      $region35: #{_lambda_.1} parent=31 // pred_region
        %s221 = smul.u32 8, %s18
        %p222 = scmp.lt.s32.totalorder %s221, 31
        %s223 = scalar_select %p222, %s221, 31
        %s224 = smul.addr %s223, 8
        %s225 = scalar_lea.vmem %s0, %s224
        %s226 = smul.u32 8, %s18
      $region36: #{_lambda_.1} parent=31 // pred_fallthru
        _
    $region32: #{_lambda_.1} parent=5 // pred_fallthru
      _
    %p227 = scmp.le.s32.totalorder 1, %s11
    %p228 = scmp.lt.s32.totalorder %s11, 5
    %p229 = pnand %p227, %p228
    %p230 = pneg %p229
    // Predicated region
    $region37: #{_lambda_.1} parent=5 // pred_check
      _
    $region38: #{_lambda_.1} parent=5 // pred_check_branch
      %232 = sbr.rel (%p229) target = $region40
    $region39: #{_lambda_.1} parent=5 // pred_region
      %s233 = ssub.s32 %s11, 1
      %s234 = smul.u32 8, %s20
      %p235 = scmp.lt.s32.totalorder %s234, 31
      %s236 = scalar_select %p235, %s234, 31
      %s237 = smul.addr %s236, 8
      %s238 = scalar_lea.vmem %s0, %s237
      %p239 = pneg %p49
      %p240 = pneg %p46
      %p241 = scmp.lt.s32.totalorder %s21, 0
      %s242 = scalar_select %p241, %s21, 0
      %s243 = smul.addr %s242, 4
      %s244 = scalar_lea.vmem %s1, %s243
      %p245 = pneg %p75
      %p246 = pneg %p72
      %p247 = scmp.lt.s32.totalorder %s21, 0
      %s248 = scalar_select %p247, %s21, 0
      %s249 = scalar_lea.vmem %s2, %s248
      %p250 = pneg %p101
      %p251 = pneg %p98
      %s252 = smul.u32 16, %s21
      %p253 = scmp.lt.s32.totalorder %s252, 15
      %s254 = scalar_select %p253, %s252, 15
      %s255 = smul.addr %s254, 4
      %s256 = scalar_lea.vmem %s3, %s255
      %p257 = pneg %p127
      %p258 = pneg %p124
      %p259 = pneg %p148
      %p260 = pneg %p145
      %p261 = pneg %p174
      %p262 = pneg %p171
      %s263 = smul.u32 8, %s20
      %p264 = scmp.lt.s32.totalorder %s263, 31
      %s265 = scalar_select %p264, %s263, 31
      %s266 = smul.addr %s265, 8
      %s267 = scalar_lea.vmem %s5, %s266
      %s268 = smul.u32 8, %s20
      %p269 = scmp.lt.s32.totalorder %s268, 31
      %s270 = scalar_select %p269, %s268, 31
      %s271 = smul.addr %s270, 8
      %s272 = scalar_lea.vmem %s0, %s271
      %s273 = smul.u32 8, %s20
      %p274 = scmp.lt.s32.totalorder %s21, 0
      %s275 = scalar_select %p274, %s21, 0
      %s276 = smul.addr %s275, 4
      %s277 = scalar_lea.vmem %s1, %s276
      %p278 = scmp.lt.s32.totalorder %s21, 0
      %s279 = scalar_select %p278, %s21, 0
      %s280 = scalar_lea.vmem %s2, %s279
      %s281 = smul.u32 16, %s21
      %p282 = scmp.lt.s32.totalorder %s281, 15
      %s283 = scalar_select %p282, %s281, 15
      %s284 = smul.addr %s283, 4
      %s285 = scalar_lea.vmem %s3, %s284
      %s286 = smul.u32 16, %s21
      %s287 = smul.u32 8, %s20
      %p288 = scmp.lt.s32.totalorder %s287, 31
      %s289 = scalar_select %p288, %s287, 31
      %s290 = smul.addr %s289, 8
      %s291 = scalar_lea.vmem %s5, %s290
      %s292 = smul.u32 8, %s20
      %p294 = scmp.eq.s32.totalorder %s21, 0
      // Predicated region
      $region41: #{_lambda_.1} parent=39 // pred_check
        %p295 = pneg %p294
      $region42: #{_lambda_.1} parent=39 // pred_check_branch
        %297 = sbr.rel (%p295) target = $region44
      $region43: #{_lambda_.1} parent=39 // pred_region
        %298 = vst [vmem:[#allocation2] sm:$0xff] 0.0
        %299 = vst [vmem:[#allocation2 + $0x8] sm:$0xff] 0.0
        %300 = vst [vmem:[#allocation2 + $0x10] sm:$0xff] 0.0
        %301 = vst [vmem:[#allocation2 + $0x18] sm:$0xff] 0.0
        %302 = vst [vmem:[#allocation2 + $0x20] sm:$0xff] 0.0
        %303 = vst [vmem:[#allocation2 + $0x28] sm:$0xff] 0.0
        %304 = vst [vmem:[#allocation2 + $0x30] sm:$0xff] 0.0
        %305 = vst [vmem:[#allocation2 + $0x38] sm:$0xff] 0.0
      $region44: #{_lambda_.1} parent=39 // pred_fallthru
        _
      %v306 = vld [vmem:[%s272] sm:$0xff]
      %v307 = vld [vmem:[%s272 + $0x8] sm:$0xff]
      %v308 = vld [vmem:[%s272 + $0x10] sm:$0xff]
      %v309 = vld [vmem:[%s272 + $0x18] sm:$0xff]
      %v310 = vld [vmem:[%s272 + $0x20] sm:$0xff]
      %v311 = vld [vmem:[%s272 + $0x28] sm:$0xff]
      %v312 = vld [vmem:[%s272 + $0x30] sm:$0xff]
      %v313 = vld [vmem:[%s272 + $0x38] sm:$0xff]
      %v314 = vpack.c.bf16 %v307, %v306
      %v315 = vpack.c.bf16 %v309, %v308
      %v316 = vpack.c.bf16 %v311, %v310
      %v317 = vpack.c.bf16 %v313, %v312
      %v318 = vld [vmem:[%s277] sm:$0xf]
      %v319 = vld [vmem:[%s277 + $0x4] sm:$0xf]
      %v320 = vld [vmem:[%s280] sm:$0x1]
      %v322 = vlaneseq
      %v323 = vshrl.u32 %v322, 7
      %v324 = vsub.s32 0, %v323
      %v325 = vrot.slane %v320, %v324
      %v329 = vunpack.c.l.b16 %v318
      %v330 = vunpack.c.l.b16 %v319
      %v331 = vpack.c.b16 %v330, %v329
      %vm333 = vcmask 130048
      %v335 = vsel %vm333, %v314, 0
      %v338 = vsel %vm333, %v315, 0
      %v341 = vsel %vm333, %v316, 0
      %v344 = vsel %vm333, %v317, 0
      %346 = vmatprep.subr.bf16.mxu0 0
      %347 = vmatpush1.bf16.msra.mxu0 %v331
      %348 = vmatprep.subr.bf16.mxu0 0
      %349 = vmatpush1.bf16.msra.mxu0 0
      %350 = vmatprep.subr.bf16.mxu0 0
      %351 = vmatpush1.bf16.msra.mxu0 0
      %352 = vmatprep.subr.bf16.mxu0 0
      %353 = vmatpush1.bf16.msra.mxu0 0
      %354 = vmatprep.subr.bf16.mxu0 0
      %355 = vmatpush1.bf16.msra.mxu0 0
      %356 = vmatprep.subr.bf16.mxu0 0
      %357 = vmatpush1.bf16.msra.mxu0 0
      %358 = vmatprep.subr.bf16.mxu0 0
      %359 = vmatpush1.bf16.msra.mxu0 0
      %360 = vmatprep.subr.bf16.mxu0 0
      %361 = vmatpush1.bf16.msra.mxu0 0
      %362 = vmatprep.subr.bf16.mxu0 0
      %363 = vmatpush1.bf16.msra.mxu0 0
      %364 = vmatprep.subr.bf16.mxu0 0
      %365 = vmatpush1.bf16.msra.mxu0 0
      %366 = vmatprep.subr.bf16.mxu0 0
      %367 = vmatpush1.bf16.msra.mxu0 0
      %368 = vmatprep.subr.bf16.mxu0 0
      %369 = vmatpush1.bf16.msra.mxu0 0
      %370 = vmatprep.subr.bf16.mxu0 0
      %371 = vmatpush1.bf16.msra.mxu0 0
      %372 = vmatprep.subr.bf16.mxu0 0
      %373 = vmatpush1.bf16.msra.mxu0 0
      %374 = vmatprep.subr.bf16.mxu0 0
      %375 = vmatpush1.bf16.msra.mxu0 0
      %376 = vmatprep.subr.bf16.mxu0 0
      %377 = vmatpush1.bf16.msra.mxu0 0
      %378 = vmatprep.mubr.bf16.mxu0 0
      %379 = vmatmul.mubr.bf16.gmra.mrb[0].mxu0 %v335
      %v380 = vpop.f32.mrb[0].mxu0
      %v381 = vadd.f32 %v325, %v380
      %v382 = vpop.f32.mrb[0].mxu0
      %v383 = vpop.f32.mrb[0].mxu0
      %v384 = vadd.f32 %v325, %v383
      %v385 = vpop.f32.mrb[0].mxu0
      %386 = vmatprep.mubr.bf16.mxu0 0
      %387 = vmatmul.mubr.bf16.gmra.mrb[0].mxu0 %v338
      %v388 = vpop.f32.mrb[0].mxu0
      %v389 = vadd.f32 %v325, %v388
      %v390 = vpop.f32.mrb[0].mxu0
      %v391 = vpop.f32.mrb[0].mxu0
      %v392 = vadd.f32 %v325, %v391
      %v393 = vpop.f32.mrb[0].mxu0
      %394 = vmatprep.mubr.bf16.mxu0 0
      %395 = vmatmul.mubr.bf16.gmra.mrb[0].mxu0 %v341
      %v396 = vpop.f32.mrb[0].mxu0
      %v397 = vadd.f32 %v325, %v396
      %v398 = vpop.f32.mrb[0].mxu0
      %v399 = vpop.f32.mrb[0].mxu0
      %v400 = vadd.f32 %v325, %v399
      %v401 = vpop.f32.mrb[0].mxu0
      %402 = vmatprep.mubr.bf16.mxu0 0
      %403 = vmatmul.mubr.bf16.gmra.mrb[0].mxu0 %v344
      %v404 = vpop.f32.mrb[0].mxu0
      %v405 = vadd.f32 %v325, %v404
      %v406 = vpop.f32.mrb[0].mxu0
      %v407 = vpop.f32.mrb[0].mxu0
      %v408 = vadd.f32 %v325, %v407
      %v409 = vpop.f32.mrb[0].mxu0
      %410 = vdwg.mxu0
      %v411 = vmax.f32 %v381, 0.0
      %v412 = vmax.f32 %v384, 0.0
      %v413 = vmax.f32 %v389, 0.0
      %v414 = vmax.f32 %v392, 0.0
      %v415 = vmax.f32 %v397, 0.0
      %v416 = vmax.f32 %v400, 0.0
      %v417 = vmax.f32 %v405, 0.0
      %v418 = vmax.f32 %v408, 0.0
      %v419 = vld [vmem:[#allocation2] sm:$0xff]
      %v420 = vld [vmem:[#allocation2 + $0x8] sm:$0xff]
      %v421 = vld [vmem:[#allocation2 + $0x10] sm:$0xff]
      %v422 = vld [vmem:[#allocation2 + $0x18] sm:$0xff]
      %v423 = vld [vmem:[#allocation2 + $0x20] sm:$0xff]
      %v424 = vld [vmem:[#allocation2 + $0x28] sm:$0xff]
      %v425 = vld [vmem:[#allocation2 + $0x30] sm:$0xff]
      %v426 = vld [vmem:[#allocation2 + $0x38] sm:$0xff]
      %v427 = vpack.c.bf16 %v412, %v411
      %v428 = vpack.c.bf16 %v414, %v413
      %v429 = vpack.c.bf16 %v416, %v415
      %v430 = vpack.c.bf16 %v418, %v417
      %v431 = vld [vmem:[%s285] sm:$0xf]
      %v432 = vld [vmem:[%s285 + $0x4] sm:$0xf]
      %v433 = vld [vmem:[%s285 + $0x8] sm:$0xf]
      %v434 = vld [vmem:[%s285 + $0xc] sm:$0xf]
      %v435 = vld [vmem:[%s285 + $0x10] sm:$0xf]
      %v436 = vld [vmem:[%s285 + $0x14] sm:$0xf]
      %v437 = vld [vmem:[%s285 + $0x18] sm:$0xf]
      %v438 = vld [vmem:[%s285 + $0x1c] sm:$0xf]
      %v439 = vld [vmem:[%s285 + $0x20] sm:$0xf]
      %v440 = vld [vmem:[%s285 + $0x24] sm:$0xf]
      %v441 = vld [vmem:[%s285 + $0x28] sm:$0xf]
      %v442 = vld [vmem:[%s285 + $0x2c] sm:$0xf]
      %v443 = vld [vmem:[%s285 + $0x30] sm:$0xf]
      %v444 = vld [vmem:[%s285 + $0x34] sm:$0xf]
      %v445 = vld [vmem:[%s285 + $0x38] sm:$0xf]
      %v446 = vld [vmem:[%s285 + $0x3c] sm:$0xf]
      %v463 = vunpack.c.l.b16 %v431
      %v464 = vunpack.c.l.b16 %v432
      %v465 = vunpack.c.l.b16 %v433
      %v466 = vunpack.c.l.b16 %v434
      %v467 = vunpack.c.l.b16 %v435
      %v468 = vunpack.c.l.b16 %v436
      %v469 = vunpack.c.l.b16 %v437
      %v470 = vunpack.c.l.b16 %v438
      %v471 = vunpack.c.l.b16 %v439
      %v472 = vunpack.c.l.b16 %v440
      %v473 = vunpack.c.l.b16 %v441
      %v474 = vunpack.c.l.b16 %v442
      %v475 = vunpack.c.l.b16 %v443
      %v476 = vunpack.c.l.b16 %v444
      %v477 = vunpack.c.l.b16 %v445
      %v478 = vunpack.c.l.b16 %v446
      %v479 = vpack.c.b16 %v464, %v463
      %v480 = vpack.c.b16 %v466, %v465
      %v481 = vpack.c.b16 %v468, %v467
      %v482 = vpack.c.b16 %v470, %v469
      %v483 = vpack.c.b16 %v472, %v471
      %v484 = vpack.c.b16 %v474, %v473
      %v485 = vpack.c.b16 %v476, %v475
      %v486 = vpack.c.b16 %v478, %v477
      %495 = vmatprep.subr.bf16.mxu0 0
      %496 = vmatpush1.bf16.msra.mxu0 %v479
      %497 = vmatprep.subr.bf16.mxu0 0
      %498 = vmatpush1.bf16.msra.mxu0 %v480
      %499 = vmatprep.subr.bf16.mxu0 0
      %500 = vmatpush1.bf16.msra.mxu0 %v481
      %501 = vmatprep.subr.bf16.mxu0 0
      %502 = vmatpush1.bf16.msra.mxu0 %v482
      %503 = vmatprep.subr.bf16.mxu0 0
      %504 = vmatpush1.bf16.msra.mxu0 %v483
      %505 = vmatprep.subr.bf16.mxu0 0
      %506 = vmatpush1.bf16.msra.mxu0 %v484
      %507 = vmatprep.subr.bf16.mxu0 0
      %508 = vmatpush1.bf16.msra.mxu0 %v485
      %509 = vmatprep.subr.bf16.mxu0 0
      %510 = vmatpush1.bf16.msra.mxu0 %v486
      %511 = vmatprep.subr.bf16.mxu0 0
      %512 = vmatpush1.bf16.msra.mxu0 0
      %513 = vmatprep.subr.bf16.mxu0 0
      %514 = vmatpush1.bf16.msra.mxu0 0
      %515 = vmatprep.subr.bf16.mxu0 0
      %516 = vmatpush1.bf16.msra.mxu0 0
      %517 = vmatprep.subr.bf16.mxu0 0
      %518 = vmatpush1.bf16.msra.mxu0 0
      %519 = vmatprep.subr.bf16.mxu0 0
      %520 = vmatpush1.bf16.msra.mxu0 0
      %521 = vmatprep.subr.bf16.mxu0 0
      %522 = vmatpush1.bf16.msra.mxu0 0
      %523 = vmatprep.subr.bf16.mxu0 0
      %524 = vmatpush1.bf16.msra.mxu0 0
      %525 = vmatprep.subr.bf16.mxu0 0
      %526 = vmatpush1.bf16.msra.mxu0 0
      %527 = vmatprep.mubr.bf16.mxu0 0
      %528 = vmatmul.mubr.bf16.gmra.mrb[0].mxu0 %v427
      %v529 = vpop.f32.mrb[0].mxu0
      %v530 = vadd.f32 0.0, %v529
      %v531 = vpop.f32.mrb[0].mxu0
      %v532 = vpop.f32.mrb[0].mxu0
      %v533 = vadd.f32 0.0, %v532
      %v534 = vpop.f32.mrb[0].mxu0
      %535 = vmatprep.mubr.bf16.mxu0 0
      %536 = vmatmul.mubr.bf16.gmra.mrb[0].mxu0 %v428
      %v537 = vpop.f32.mrb[0].mxu0
      %v538 = vadd.f32 0.0, %v537
      %v539 = vpop.f32.mrb[0].mxu0
      %v540 = vpop.f32.mrb[0].mxu0
      %v541 = vadd.f32 0.0, %v540
      %v542 = vpop.f32.mrb[0].mxu0
      %543 = vmatprep.mubr.bf16.mxu0 0
      %544 = vmatmul.mubr.bf16.gmra.mrb[0].mxu0 %v429
      %v545 = vpop.f32.mrb[0].mxu0
      %v546 = vadd.f32 0.0, %v545
      %v547 = vpop.f32.mrb[0].mxu0
      %v548 = vpop.f32.mrb[0].mxu0
      %v549 = vadd.f32 0.0, %v548
      %v550 = vpop.f32.mrb[0].mxu0
      %551 = vmatprep.mubr.bf16.mxu0 0
      %552 = vmatmul.mubr.bf16.gmra.mrb[0].mxu0 %v430
      %v553 = vpop.f32.mrb[0].mxu0
      %v554 = vadd.f32 0.0, %v553
      %v555 = vpop.f32.mrb[0].mxu0
      %v556 = vpop.f32.mrb[0].mxu0
      %v557 = vadd.f32 0.0, %v556
      %v558 = vpop.f32.mrb[0].mxu0
      %559 = vdwg.mxu0
      %v560 = vadd.f32 %v419, %v530
      %v561 = vadd.f32 %v420, %v533
      %v562 = vadd.f32 %v421, %v538
      %v563 = vadd.f32 %v422, %v541
      %v564 = vadd.f32 %v423, %v546
      %v565 = vadd.f32 %v424, %v549
      %v566 = vadd.f32 %v425, %v554
      %v567 = vadd.f32 %v426, %v557
      %568 = vst [vmem:[#allocation2] sm:$0xff] %v560
      %569 = vst [vmem:[#allocation2 + $0x8] sm:$0xff] %v561
      %570 = vst [vmem:[#allocation2 + $0x10] sm:$0xff] %v562
      %571 = vst [vmem:[#allocation2 + $0x18] sm:$0xff] %v563
      %572 = vst [vmem:[#allocation2 + $0x20] sm:$0xff] %v564
      %573 = vst [vmem:[#allocation2 + $0x28] sm:$0xff] %v565
      %574 = vst [vmem:[#allocation2 + $0x30] sm:$0xff] %v566
      %575 = vst [vmem:[#allocation2 + $0x38] sm:$0xff] %v567
      // Predicated region
      $region45: #{_lambda_.1} parent=39 // pred_check
        %p576 = pneg %p294
      $region46: #{_lambda_.1} parent=39 // pred_check_branch
        %578 = sbr.rel (%p576) target = $region48
      $region47: #{_lambda_.1} parent=39 // pred_region
        %v579 = vld [vmem:[#allocation2] sm:$0xff]
        %v580 = vld [vmem:[#allocation2 + $0x8] sm:$0xff]
        %v581 = vld [vmem:[#allocation2 + $0x10] sm:$0xff]
        %v582 = vld [vmem:[#allocation2 + $0x18] sm:$0xff]
        %v583 = vld [vmem:[#allocation2 + $0x20] sm:$0xff]
        %v584 = vld [vmem:[#allocation2 + $0x28] sm:$0xff]
        %v585 = vld [vmem:[#allocation2 + $0x30] sm:$0xff]
        %v586 = vld [vmem:[#allocation2 + $0x38] sm:$0xff]
        %v587 = vld [vmem:[%s4] sm:$0x1]
        %v589 = vlaneseq
        %v590 = vshrl.u32 %v589, 7
        %v591 = vsub.s32 0, %v590
        %v592 = vrot.slane %v587, %v591
        %v594 = vadd.f32 %v579, %v592
        %v595 = vadd.f32 %v580, %v592
        %v596 = vadd.f32 %v581, %v592
        %v597 = vadd.f32 %v582, %v592
        %v598 = vadd.f32 %v583, %v592
        %v599 = vadd.f32 %v584, %v592
        %v600 = vadd.f32 %v585, %v592
        %v601 = vadd.f32 %v586, %v592
        %602 = vst [vmem:[%s291] sm:$0xff] %v594
        %603 = vst [vmem:[%s291 + $0x8] sm:$0xff] %v595
        %604 = vst [vmem:[%s291 + $0x10] sm:$0xff] %v596
        %605 = vst [vmem:[%s291 + $0x18] sm:$0xff] %v597
        %606 = vst [vmem:[%s291 + $0x20] sm:$0xff] %v598
        %607 = vst [vmem:[%s291 + $0x28] sm:$0xff] %v599
        %608 = vst [vmem:[%s291 + $0x30] sm:$0xff] %v600
        %609 = vst [vmem:[%s291 + $0x38] sm:$0xff] %v601
      $region48: #{_lambda_.1} parent=39 // pred_fallthru
        _
      %s610 = smul.u32 8, %s20
      %p611 = scmp.lt.s32.totalorder %s610, 31
      %s612 = scalar_select %p611, %s610, 31
      %s613 = smul.addr %s612, 8
      %s614 = scalar_lea.vmem %s5, %s613
      // Predicated region
      $region49: #{_lambda_.1} parent=39 // pred_check
        %p615 = pneg %p171
      $region50: #{_lambda_.1} parent=39 // pred_check_branch
        %617 = sbr.rel (%p615) target = $region52
      $region51: #{_lambda_.1} parent=39 // pred_region
        %s618 = smul.u32 8, %s20
      $region52: #{_lambda_.1} parent=39 // pred_fallthru
        _
    $region40: #{_lambda_.1} parent=5 // pred_fallthru
      _
    %p619 = scmp.le.s32.totalorder 2, %s11
    // Predicated region
    $region53: #{_lambda_.1} parent=5 // pred_check
      %p620 = pneg %p619
    $region54: #{_lambda_.1} parent=5 // pred_check_branch
      %622 = sbr.rel (%p620) target = $region56
    $region55: #{_lambda_.1} parent=5 // pred_region
      %s623 = ssub.s32 %s11, 2
      // Predicated region
      $region57: #{_lambda_.1} parent=55 // pred_check
        %p624 = pneg %p177
      $region58: #{_lambda_.1} parent=55 // pred_check_branch
        %626 = sbr.rel (%p624) target = $region60
      $region59: #{_lambda_.1} parent=55 // pred_region
        %s627 = smul.u32 8, %s22
        %p628 = scmp.lt.s32.totalorder %s627, 31
        %s629 = scalar_select %p628, %s627, 31
        %s630 = smul.addr %s629, 8
        %s631 = scalar_lea.vmem %s5, %s630
      $region60: #{_lambda_.1} parent=55 // pred_fallthru
        _
    $region56: #{_lambda_.1} parent=5 // pred_fallthru
      _
  $region6: #{_lambda_.1} parent=0 // loop_footer
    %s15 = sadd.s32 1, %s11
  $region7: #{_lambda_.1} parent=0 // loop_footer_branch
    %10 = sbr.rel target = $region3
  $region8: #{_lambda_.1} parent=0 // loop_exit
    _

</llo_original>
